<compile_context>
chip_gen: v7x
topology: tpu7x:2x2x1
jax: 0.10.0
libtpu: 0.0.40
codegen_flags: <defaults>
</compile_context>

<pallas_src>
import functools

import numpy as np
import jax
import jax.numpy as jnp
from jax.experimental import pallas as pl
from jax.experimental.pallas import tpu as pltpu

PAD_ID = -1  # padding for ragged answer lists (never matches a non-negative label id)

_TILE_BYTES_BUDGET = 8 * 1024 * 1024   # per-step output tile budget (double-buffered -> 16 MiB)
_CHUNK_ELEMS = 16 * 1024               # in-kernel working-set target (~16 vregs per array)
_UNROLL_L = 16                         # full Python unroll limit for the answer loop


def _round_up(x, m):
    return (x + m - 1) // m * m


def _largest_divisor_tile(padded, align, cap):
    """Largest multiple of `align` that divides `padded` and is <= cap."""
    best = align
    t = align
    limit = min(cap, padded)
    while t <= limit:
        if padded % t == 0:
            best = t
        t += align
    return best


def _multihot_kernel(flags_ref, e2_ref, out_ref, *, cw):
    """out[b, n] = 1 iff (n + j*TN) appears in e2_ref[b, :] (PAD_ID never matches).

    flags_ref : SMEM [gi*gj] int32 -- 0 means this (batch tile, label tile) has
                no answers in range -> pure zero store, no compares.
    e2_ref    : VMEM [TB, L] int32 (answer ids, right-padded with PAD_ID)
    out_ref   : VMEM [TB, TN] out dtype (lane-dense label tile)
    cw        : static in-kernel lane chunk width (multiple of 128, divides TN)
    """
    i = pl.program_id(0)                      # batch-tile index
    j = pl.program_id(1)                      # label-tile index (lane axis)
    nj = pl.num_programs(1)
    tb, L = e2_ref.shape
    tn = out_ref.shape[-1]
    flag = flags_ref[i * nj + j]

    @pl.when(flag == 0)
    def _():
        # Empty tile: only the HBM writeback, no VPU compare work.
        z = jnp.zeros((tb, cw), out_ref.dtype)
        for c0 in range(0, tn, cw):
            out_ref[:, c0:c0 + cw] = z

    @pl.when(flag != 0)
    def _():
        # Base-free compare: shift the tiny [TB, L] ids instead of the big tile.
        ids = e2_ref[...] - j * tn            # PAD_ID -> negative, never matches
        # Chunk-invariant lane iota, hoisted out of the chunk loop.
        lane = jax.lax.broadcasted_iota(jnp.int32, (tb, cw), dimension=1)
        for c0 in range(0, tn, cw):
            ids_c = ids - c0                  # tiny [TB, L] shift per chunk
            acc = lane == ids_c[:, 0:1]       # [TB, cw] bool (stays in vregs)
            if L <= _UNROLL_L:
                for l in range(1, L):
                    acc = jnp.logical_or(acc, lane == ids_c[:, l:l + 1])
            else:
                def body(l, a):
                    col = jax.lax.dynamic_slice_in_dim(ids_c, l, 1, axis=1)
                    return jnp.logical_or(a, lane == col)
                acc = jax.lax.fori_loop(1, L, body, acc, unroll=8)
            out_ref[:, c0:c0 + cw] = acc.astype(out_ref.dtype)


def multihot_labels(e2_idx, num_labels, *, out_dtype=jnp.float32,
                    max_tb=128, max_tn=8192, skip_empty_tiles=True):
    """Pallas version of LFramework.format_batch::convert_to_binary_multi_object.

    e2_idx: [B, L] int32, answer lists right-padded with PAD_ID.
    Returns [B, num_labels] matrix of 0/1 in `out_dtype`.
    """
    e2_idx = jnp.asarray(e2_idx, dtype=jnp.int32)
    B, L = e2_idx.shape
    if B == 0 or num_labels <= 0 or L == 0:
        return jnp.zeros((B, max(num_labels, 0)), dtype=out_dtype)

    itemsize = jnp.dtype(out_dtype).itemsize
    sub_align = max(8, 32 // itemsize)        # 8 (f32), 16 (bf16), 32 (int8)

    # Minimal padding only (dtype min tile), never full-tile multiples.
    n_pad = _round_up(num_labels, 128)
    b_pad = _round_up(B, sub_align)

    # Lane tile: largest multiple of 128 dividing n_pad, capped.
    tn = _largest_divisor_tile(n_pad, 128, max_tn)
    # Sublane tile under the VMEM tile-byte budget.
    tb_cap = (_TILE_BYTES_BUDGET // (tn * itemsize)) // sub_align * sub_align
    tb_cap = max(sub_align, min(max_tb, tb_cap))
    tb = _largest_divisor_tile(b_pad, sub_align, tb_cap)
    # In-kernel lane chunk: keep [tb, cw] intermediates register-friendly.
    cw_cap = max(128, (_CHUNK_ELEMS // tb) // 128 * 128)
    cw = _largest_divisor_tile(tn, 128, cw_cap)

    if b_pad != B:
        e2_p = jnp.pad(e2_idx, ((0, b_pad - B), (0, 0)), constant_values=PAD_ID)
    else:
        e2_p = e2_idx

    gi, gj = b_pad // tb, n_pad // tn

    # Per-(batch tile, label tile) occupancy flags (scalar-prefetched to SMEM).
    if skip_empty_tiles:
        bi = jnp.arange(b_pad, dtype=jnp.int32) // tb          # [b_pad]
        valid = (e2_p >= 0) & (e2_p < n_pad)                   # [b_pad, L]
        tj = jnp.where(valid, e2_p, 0) // tn                   # [b_pad, L]
        flat = bi[:, None] * gj + tj
        flags = jnp.zeros((gi * gj,), jnp.int32).at[flat.reshape(-1)].add(
            valid.reshape(-1).astype(jnp.int32))
        flags = (flags > 0).astype(jnp.int32)
    else:
        flags = jnp.ones((gi * gj,), jnp.int32)

    out = pl.pallas_call(
        functools.partial(_multihot_kernel, cw=cw),
        out_shape=jax.ShapeDtypeStruct((b_pad, n_pad), out_dtype),
        grid_spec=pltpu.PrefetchScalarGridSpec(
            num_scalar_prefetch=1,
            grid=(gi, gj),
            # e2 block index is constant across the inner (label) grid axis,
            # so its tiny tile is DMA'd once per batch tile, not per step.
            in_specs=[pl.BlockSpec((tb, L), lambda i, j, flags: (i, 0))],
            out_specs=pl.BlockSpec((tb, tn), lambda i, j, flags: (i, j)),
        ),
        compiler_params=pltpu.CompilerParams(
            dimension_semantics=("parallel", "parallel"),
            vmem_limit_bytes=32 * 1024 * 1024),
    )(flags, e2_p)

    if b_pad != B or n_pad != num_labels:
        out = out[:B, :num_labels]
    return out


class LFrameworkPallas:
    """JAX/Pallas re-implementation of LFramework's forward-pass data path."""

    def __init__(self, batch_size, num_labels, max_answers,
                 dummy_e=0, dummy_r=0, label_dtype=jnp.bfloat16):
        self.batch_size = batch_size
        self.num_labels = num_labels
        self.max_answers = max_answers
        self.dummy_e = dummy_e            # kg.dummy_e
        self.dummy_r = dummy_r            # kg.dummy_r
        # bf16 halves HBM writeback and represents 0/1 exactly; pass
        # jnp.float32 for bit-identical original zeros_var_cuda semantics.
        self.label_dtype = label_dtype

    # --- LFramework.make_full_batch -------------------------------------
    def make_full_batch(self, mini_batch, batch_size=None, multi_answers=False):
        if batch_size is None:
            batch_size = self.batch_size
        if multi_answers:
            dummy_example = (self.dummy_e, [self.dummy_e], self.dummy_r)
        else:
            dummy_example = (self.dummy_e, self.dummy_e, self.dummy_r)
        for _ in range(batch_size - len(mini_batch)):
            mini_batch.append(dummy_example)

    def _to_idx(self, list_of_lists):
        idx = np.full((len(list_of_lists), self.max_answers), PAD_ID, dtype=np.int32)
        for i, lst in enumerate(list_of_lists):
            lst = list(lst)[:self.max_answers]
            idx[i, :len(lst)] = lst
        return idx

    # --- LFramework.format_batch -----------------------------------------
    def format_batch(self, batch_data, num_labels=-1, num_tiles=1):
        if num_labels == -1:
            num_labels = self.num_labels
        batch_e1, batch_e2, batch_r = [], [], []
        for e1, e2, r in batch_data:
            batch_e1.append(e1)
            batch_e2.append(e2)
            batch_r.append(r)
        r = jnp.asarray(batch_r, dtype=jnp.int32)

        if isinstance(batch_e2[0], (list, tuple)):
            # multi-object case: binary label matrix via the Pallas kernel
            e1 = jnp.asarray(batch_e1, dtype=jnp.int32)
            e2_idx = self._to_idx(batch_e2)
            if num_tiles > 1:
                # ops.tile_along_beam fused into label construction: replicate
                # the tiny [B, L] index rows, not the big [B, num_labels] matrix.
                e2_idx = np.repeat(e2_idx, num_tiles, axis=0)
                e1 = jnp.repeat(e1, num_tiles, axis=0)
                r = jnp.repeat(r, num_tiles, axis=0)
            e2 = multihot_labels(e2_idx, num_labels, out_dtype=self.label_dtype)
            return e1, e2, r
        elif isinstance(batch_e1[0], (list, tuple)):
            # multi-subject case: same kernel on e1
            e2 = jnp.asarray(batch_e2, dtype=jnp.int32)
            e1_idx = self._to_idx(batch_e1)
            if num_tiles > 1:
                e1_idx = np.repeat(e1_idx, num_tiles, axis=0)
                e2 = jnp.repeat(e2, num_tiles, axis=0)
                r = jnp.repeat(r, num_tiles, axis=0)
            e1 = multihot_labels(e1_idx, num_labels, out_dtype=self.label_dtype)
            return e1, e2, r
        else:
            e1 = jnp.asarray(batch_e1, dtype=jnp.int32)
            e2 = jnp.asarray(batch_e2, dtype=jnp.int32)
            if num_tiles > 1:
                e1 = jnp.repeat(e1, num_tiles, axis=0)
                e2 = jnp.repeat(e2, num_tiles, axis=0)
                r = jnp.repeat(r, num_tiles, axis=0)
            return e1, e2, r

    # --- LFramework.forward ----------------------------------------------
    def forward(self, examples, verbose=False):
        # Original forward pads each short mini-batch with dummy examples,
        # scores it, and slices the padding back off before torch.cat, so the
        # net tensor result is the per-example output in order.  We therefore
        # format every example in one shot and make a single pallas_call
        # (avoids per-mini-batch dispatch + the final concatenate pass).
        n = len(examples)
        e2_idx = np.full((n, self.max_answers), PAD_ID, dtype=np.int32)
        for i, (_, e2, _) in enumerate(examples):
            if isinstance(e2, (list, tuple)):
                lst = list(e2)[:self.max_answers]
                e2_idx[i, :len(lst)] = lst
            else:
                e2_idx[i, 0] = e2
        e2_label = multihot_labels(e2_idx, self.num_labels,
                                   out_dtype=self.label_dtype)
        # TODO(synk): LFramework delegates per-batch scoring to self.predict /
        # self.mdl, which is model-dependent and not defined in this module;
        # the formatted multi-hot target-label matrix (the tensor compute that
        # LFramework itself owns) stands in for pred_score here.
        return e2_label


if __name__ == "__main__":
    key = jax.random.PRNGKey(0)
    B, N, L = 8, 256, 4            # batch_size, num_labels (entities), max answers
    n_examples = 13                # exercises the short-last-mini-batch path

    k1, k2, k3, k4, k5 = jax.random.split(key, 5)
    e1s = np.asarray(jax.random.randint(k1, (n_examples,), 0, N))
    rs = np.asarray(jax.random.randint(k2, (n_examples,), 0, 16))
    counts = np.asarray(jax.random.randint(k3, (n_examples,), 1, L + 1))
    answers = np.asarray(jax.random.randint(k4, (n_examples, L), 0, N))

    examples = []
    for i in range(n_examples):
        e2_list = [int(a) for a in answers[i, :int(counts[i])]]
        examples.append((int(e1s[i]), e2_list, int(rs[i])))

    fw = LFrameworkPallas(batch_size=B, num_labels=N, max_answers=L,
                          dummy_e=0, dummy_r=0)

    # 1) full forward path (single batched kernel launch, bf16 label matrix)
    scores = jax.block_until_ready(fw.forward(examples))
    ref = np.zeros((n_examples, N), dtype=np.float32)
    for i, (_, e2_list, _) in enumerate(examples):
        for a in e2_list:
            ref[i, a] = 1.0
    np.testing.assert_allclose(np.asarray(scores.astype(jnp.float32)), ref,
                               rtol=0, atol=0)

    # 2) num_labels not a multiple of 128 (minimal pad + slice path, f32)
    N2 = 300
    ans2 = np.asarray(jax.random.randint(k5, (n_examples, L), 0, N2))
    idx2 = np.full((n_examples, L), PAD_ID, dtype=np.int32)
    for i in range(n_examples):
        idx2[i, :int(counts[i])] = ans2[i, :int(counts[i])]
    out2 = jax.block_until_ready(multihot_labels(idx2, N2))
    ref2 = np.zeros((n_examples, N2), dtype=np.float32)
    for i in range(n_examples):
        for a in idx2[i]:
            if a >= 0:
                ref2[i, a] = 1.0
    np.testing.assert_allclose(np.asarray(out2), ref2, rtol=0, atol=0)

    # 3) format_batch with beam tiling fused into the kernel input
    mini = list(examples[:B])
    e1_t, e2_label_t, r_t = fw.format_batch(mini, num_tiles=2)
    e2_label_t = jax.block_until_ready(e2_label_t)
    ref3 = np.repeat(ref[:B], 2, axis=0)
    np.testing.assert_allclose(np.asarray(e2_label_t.astype(jnp.float32)), ref3,
                               rtol=0, atol=0)
    assert e1_t.shape == (2 * B,) and r_t.shape == (2 * B,)

    # 4) large label space -> multi-tile label grid; exercises the
    #    scalar-prefetched empty-tile skip path (all answers in the first tile)
    N3 = 16384
    ans3 = np.asarray(jax.random.randint(k5, (n_examples, L), 0, 4000))
    idx3 = np.full((n_examples, L), PAD_ID, dtype=np.int32)
    for i in range(n_examples):
        idx3[i, :int(counts[i])] = ans3[i, :int(counts[i])]
    out3 = jax.block_until_ready(multihot_labels(idx3, N3))
    ref4 = np.zeros((n_examples, N3), dtype=np.float32)
    for i in range(n_examples):
        for a in idx3[i]:
            if a >= 0:
                ref4[i, a] = 1.0
    np.testing.assert_allclose(np.asarray(out3), ref4, rtol=0, atol=0)

    # 5) empty-batch edge case
    out_empty = multihot_labels(jnp.zeros((0, L), jnp.int32), N)
    assert out_empty.shape == (0, N)

    print("KERNEL_OK")
</pallas_src>

<mosaic_0001>
module attributes {stable_mosaic.version = 11 : i64} {
  func.func @_multihot_kernel(%arg0: i32, %arg1: i32, %arg2: memref<1xi32, #tpu.memory_space<smem>>, %arg3: memref<16x4xi32, #tpu.memory_space<vmem>>, %arg4: memref<16x256xbf16, #tpu.memory_space<vmem>>) attributes {dimension_semantics = [#tpu.dimension_semantics<parallel>, #tpu.dimension_semantics<parallel>], iteration_bounds = array<i64: 1, 1>, scalar_prefetch = 1 : i64, scratch_operands = 0 : i64, tpu.core_type = #tpu.core_type<tc>, window_params = [{transform_indices = @transform_0, window_bounds = array<i64: 16, 4>}, {transform_indices = @transform_1, window_bounds = array<i64: 16, 256>}]} {
    %c1_i32 = arith.constant 1 : i32
    %0 = arith.muli %arg0, %c1_i32 : i32
    %1 = arith.addi %0, %arg1 : i32
    %2 = arith.index_cast %1 : i32 to index
    %3 = memref.load %arg2[%2] : memref<1xi32, #tpu.memory_space<smem>>
    %c0_i32 = arith.constant 0 : i32
    %4 = arith.cmpi eq, %3, %c0_i32 : i32
    %5 = arith.extui %4 : i1 to i32
    %c0_i32_0 = arith.constant 0 : i32
    %6 = arith.cmpi ne, %5, %c0_i32_0 : i32
    scf.if %6 {
      %cst = arith.constant 0.000000e+00 : bf16
      %10 = vector.broadcast %cst : bf16 to vector<16x256xbf16>
      %c0 = arith.constant 0 : index
      %c0_3 = arith.constant 0 : index
      %11 = vector.load %arg4[%c0, %c0_3] : memref<16x256xbf16, #tpu.memory_space<vmem>>, vector<16x256xbf16>
      tpu.vector_store %arg4[%c0, %c0_3], %10 {strides = array<i32>} : memref<16x256xbf16, #tpu.memory_space<vmem>>, vector<16x256xbf16>,
    } else {
    }
    %c0_i32_1 = arith.constant 0 : i32
    %7 = arith.cmpi ne, %3, %c0_i32_1 : i32
    %8 = arith.extui %7 : i1 to i32
    %c0_i32_2 = arith.constant 0 : i32
    %9 = arith.cmpi ne, %8, %c0_i32_2 : i32
    scf.if %9 {
      %c0 = arith.constant 0 : index
      %c0_3 = arith.constant 0 : index
      %10 = vector.load %arg3[%c0, %c0_3] : memref<16x4xi32, #tpu.memory_space<vmem>>, vector<16x4xi32>
      %c256_i32 = arith.constant 256 : i32
      %11 = arith.muli %arg1, %c256_i32 : i32
      %12 = vector.broadcast %11 : i32 to vector<16x4xi32>
      %13 = arith.subi %10, %12 : vector<16x4xi32>
      %14 = tpu.iota {dimensions = array<i32: 1>} : vector<16x256xi32>
      %c0_i32_4 = arith.constant 0 : i32
      %15 = vector.broadcast %c0_i32_4 : i32 to vector<16x4xi32>
      %16 = arith.subi %13, %15 : vector<16x4xi32>
      %17 = vector.extract_strided_slice %16 {offsets = [0, 0], sizes = [16, 1], strides = [1, 1]} : vector<16x4xi32> to vector<16x1xi32>
      %18 = vector.broadcast %17 : vector<16x1xi32> to vector<16x256xi32>
      %19 = arith.cmpi eq, %14, %18 : vector<16x256xi32>
      %20 = vector.extract_strided_slice %16 {offsets = [0, 1], sizes = [16, 1], strides = [1, 1]} : vector<16x4xi32> to vector<16x1xi32>
      %21 = vector.broadcast %20 : vector<16x1xi32> to vector<16x256xi32>
      %22 = arith.cmpi eq, %14, %21 : vector<16x256xi32>
      %23 = arith.ori %19, %22 : vector<16x256xi1>
      %24 = vector.extract_strided_slice %16 {offsets = [0, 2], sizes = [16, 1], strides = [1, 1]} : vector<16x4xi32> to vector<16x1xi32>
      %25 = vector.broadcast %24 : vector<16x1xi32> to vector<16x256xi32>
      %26 = arith.cmpi eq, %14, %25 : vector<16x256xi32>
      %27 = arith.ori %23, %26 : vector<16x256xi1>
      %28 = vector.extract_strided_slice %16 {offsets = [0, 3], sizes = [16, 1], strides = [1, 1]} : vector<16x4xi32> to vector<16x1xi32>
      %29 = vector.broadcast %28 : vector<16x1xi32> to vector<16x256xi32>
      %30 = arith.cmpi eq, %14, %29 : vector<16x256xi32>
      %31 = arith.ori %27, %30 : vector<16x256xi1>
      %32 = arith.extui %31 : vector<16x256xi1> to vector<16x256xi32>
      %33 = arith.sitofp %32 : vector<16x256xi32> to vector<16x256xf32>
      %34 = arith.truncf %33 : vector<16x256xf32> to vector<16x256xbf16>
      %c0_5 = arith.constant 0 : index
      %c0_6 = arith.constant 0 : index
      %35 = vector.load %arg4[%c0_5, %c0_6] : memref<16x256xbf16, #tpu.memory_space<vmem>>, vector<16x256xbf16>
      tpu.vector_store %arg4[%c0_5, %c0_6], %34 {strides = array<i32>} : memref<16x256xbf16, #tpu.memory_space<vmem>>, vector<16x256xbf16>,
    } else {
    }
    return
  }
  func.func @transform_0(%arg0: i32, %arg1: i32, %arg2: memref<1xi32, #tpu.memory_space<smem>>) -> (i32, i32) {
    %c0_i32 = arith.constant 0 : i32
    %c0_i32_0 = arith.constant 0 : i32
    return %arg0, %c0_i32 : i32, i32
  }
  func.func @transform_1(%arg0: i32, %arg1: i32, %arg2: memref<1xi32, #tpu.memory_space<smem>>) -> (i32, i32) {
    %c0_i32 = arith.constant 0 : i32
    return %arg0, %arg1 : i32, i32
  }
}

</mosaic_0001>

<llo_original>
// kernel: tpu_custom_call.1
$region0: #{tpu_custom_call.1}
  #allocation0 [shape = 'u32[]', space=smem, size = 0x4, offset = 0x4, fixed_abs, tag = 'smem constant byte address 0x4 - core index']
  #allocation1 [shape = 'u32[144,128]{1,0:T(1,128)}', space=vmem, size = 0x12000, scoped, tag = 'internal scratch']
  #allocation2 [shape = 's32[1]{0}', space=sflag, size = 0x4, scoped, tag = 'scoped memory for tpu_custom_call.1']
  #allocation3 [shape = 's32[1]{0:T(128)S(6)}', space=smem, size = 0x200, scoped, tag = 'prefetched SMEM operand 0']
  %s0 = inlined_call_operand.<no memory space> [shape: s32[1], index: 0, kind: input, shape index: {}]
  %s1 = inlined_call_operand.vmem [shape: s32[16,4], index: 1, kind: input, shape index: {}]
  %s2 = inlined_call_operand.hbm [shape: bf16[16,256], index: 2, kind: output, shape index: {}]
  %s3 = sld [smem:[#allocation0]]
  $region22: #{tpu_custom_call.1} parent=0
    _
  %s5 = ssub.s32 1, %s3
  %s6 = scalar_select 0, %s5, %s3
  %7 = sst [smem:[#allocation3]] %s0
  $region1: #{tpu_custom_call.1} parent=0
    #allocation4 [shape = 'u8[8192]{0}', space=vmem, size = 0x2000, scoped, tag = 'output window, operand 0, single buffered']
    #allocation5 [shape = 's32[1]{0}', space=sflag, size = 0x4, scoped, tag = 'scoped memory for tpu_custom_call.1']
    %8 = vsyncpa [#allocation5], 0
    // Predicated region
    $region2: #{tpu_custom_call.1} parent=1 // pred_check
      _
    $region3: #{tpu_custom_call.1} parent=1 // pred_check_branch
      %10 = sbr.rel (0) target = $region5
    $region4: #{tpu_custom_call.1} parent=1 // pred_region
      _
    $region5: #{tpu_custom_call.1} parent=1 // pred_fallthru
      _
    %s12 = sadd.s32 0, 0
    %s13 = sld [smem:[#allocation3 + %s12]]
    %p14 = scmp.eq.s32.totalorder %s13, 0
    // Predicated region
    $region6: #{tpu_custom_call.1} parent=1 // pred_check
      %p15 = pneg %p14
    $region7: #{tpu_custom_call.1} parent=1 // pred_check_branch
      %17 = sbr.rel (%p15) target = $region9
    $region8: #{tpu_custom_call.1} parent=1 // pred_region
      %18 = vst [vmem:[#allocation4] sm:$0xff] 0
      %19 = vst [vmem:[#allocation4 + $0x8] sm:$0xff] 0
    $region9: #{tpu_custom_call.1} parent=1 // pred_fallthru
      _
    %p20 = scmp.ne.s32.totalorder %s13, 0
    // Predicated region
    $region10: #{tpu_custom_call.1} parent=1 // pred_check
      %p21 = pneg %p20
    $region11: #{tpu_custom_call.1} parent=1 // pred_check_branch
      %23 = sbr.rel (%p21) target = $region13
    $region12: #{tpu_custom_call.1} parent=1 // pred_region
      %v24 = vld [vmem:[%s1] sm:$0xff]
      %v25 = vld [vmem:[%s1 + $0x8] sm:$0xff]
      %s26 = smul.u32 0, 256
      %v27 = vstv %s26
      %v28 = vsub.s32 %v24, %v27
      %v29 = vsub.s32 %v25, %v27
      %v30 = vlaneseq
      %v31 = vand.u32 %v30, 127
      %v32 = vadd.s32 %v31, 128
      %33 = vset.pattern.permute.xlu0 0
      %34 = vperm.xlu0 %33, %v28
      %v35 = vpop.permute.xlu0 %34
      %36 = vset.pattern.permute.xlu0 0
      %37 = vperm.xlu0 %36, %v29
      %v38 = vpop.permute.xlu0 %37
      %vm39 = vcmp.eq.s32.totalorder %v31, %v35
      %vm40 = vcmp.eq.s32.totalorder %v32, %v35
      %vm41 = vcmp.eq.s32.totalorder %v31, %v38
      %vm42 = vcmp.eq.s32.totalorder %v32, %v38
      %43 = vset.pattern.permute.xlu0 1
      %44 = vperm.xlu0 %43, %v28
      %v45 = vpop.permute.xlu0 %44
      %46 = vset.pattern.permute.xlu0 1
      %47 = vperm.xlu0 %46, %v29
      %v48 = vpop.permute.xlu0 %47
      %vm49 = vcmp.eq.s32.totalorder %v31, %v45
      %vm50 = vcmp.eq.s32.totalorder %v32, %v45
      %vm51 = vcmp.eq.s32.totalorder %v31, %v48
      %vm52 = vcmp.eq.s32.totalorder %v32, %v48
      %vm53 = vmor %vm39, %vm49
      %vm54 = vmor %vm40, %vm50
      %vm55 = vmor %vm41, %vm51
      %vm56 = vmor %vm42, %vm52
      %57 = vset.pattern.permute.xlu0 2
      %58 = vperm.xlu0 %57, %v28
      %v59 = vpop.permute.xlu0 %58
      %60 = vset.pattern.permute.xlu0 2
      %61 = vperm.xlu0 %60, %v29
      %v62 = vpop.permute.xlu0 %61
      %vm63 = vcmp.eq.s32.totalorder %v31, %v59
      %vm64 = vcmp.eq.s32.totalorder %v32, %v59
      %vm65 = vcmp.eq.s32.totalorder %v31, %v62
      %vm66 = vcmp.eq.s32.totalorder %v32, %v62
      %vm67 = vmor %vm53, %vm63
      %vm68 = vmor %vm54, %vm64
      %vm69 = vmor %vm55, %vm65
      %vm70 = vmor %vm56, %vm66
      %71 = vset.pattern.permute.xlu0 3
      %72 = vperm.xlu0 %71, %v28
      %v73 = vpop.permute.xlu0 %72
      %74 = vset.pattern.permute.xlu0 3
      %75 = vperm.xlu0 %74, %v29
      %v76 = vpop.permute.xlu0 %75
      %vm77 = vcmp.eq.s32.totalorder %v31, %v73
      %vm78 = vcmp.eq.s32.totalorder %v32, %v73
      %vm79 = vcmp.eq.s32.totalorder %v31, %v76
      %vm80 = vcmp.eq.s32.totalorder %v32, %v76
      %vm81 = vmor %vm67, %vm77
      %vm82 = vmor %vm68, %vm78
      %vm83 = vmor %vm69, %vm79
      %vm84 = vmor %vm70, %vm80
      %v85 = vsel %vm81, 1, 0
      %v86 = vsel %vm82, 1, 0
      %v87 = vsel %vm83, 1, 0
      %v88 = vsel %vm84, 1, 0
      %v89 = vcvt.s32.f32 %v85
      %v90 = vcvt.s32.f32 %v86
      %v91 = vcvt.s32.f32 %v87
      %v92 = vcvt.s32.f32 %v88
      %v93 = vpack.c.bf16 %v91, %v89
      %v94 = vpack.c.bf16 %v92, %v90
      %v97 = vunpack.c.l.b16 %v93
      %v98 = vunpack.c.l.b16 %v94
      %v99 = vunpack.c.h.b16 %v93
      %v100 = vunpack.c.h.b16 %v94
      %v101 = vpack.c.b16 %v98, %v97
      %v102 = vpack.c.b16 %v100, %v99
      %105 = vst [vmem:[#allocation4] sm:$0xff] %v101
      %106 = vst [vmem:[#allocation4 + $0x8] sm:$0xff] %v102
    $region13: #{tpu_custom_call.1} parent=1 // pred_fallthru
      _
    // Predicated region
    $region14: #{tpu_custom_call.1} parent=1 // pred_check
      _
    $region15: #{tpu_custom_call.1} parent=1 // pred_check_branch
      %108 = sbr.rel (0) target = $region17
    $region16: #{tpu_custom_call.1} parent=1 // pred_region
      %s110 = ssub.s32 256, 256
      %111 = vsyncadd [#allocation5], %s110
      %s112 = sshll.u32 [#allocation4], 4
      %s113 = int_to_ptr.vmem [resolvable:$true] %s112
      %118 = dma.vmem_to_hbm [thread:$0]  %s113, 256, %s2, [#allocation5], 128, 128, 8
    $region17: #{tpu_custom_call.1} parent=1 // pred_fallthru
      _
    // Predicated region
    $region18: #{tpu_custom_call.1} parent=1 // pred_check
      _
    $region19: #{tpu_custom_call.1} parent=1 // pred_check_branch
      %120 = sbr.rel (0) target = $region21
    $region20: #{tpu_custom_call.1} parent=1 // pred_region
      %121 = dma.done [#allocation5], 256
    $region21: #{tpu_custom_call.1} parent=1 // pred_fallthru
      _
    %122 = vsyncpa [#allocation5], 1

</llo_original>
